<compile_context>
chip_gen: v7x
topology: tpu7x:2x2x1
jax: 0.10.0
libtpu: 0.0.40
codegen_flags: <defaults>
</compile_context>

<pallas_src>
import functools

import jax
import jax.numpy as jnp
from jax.experimental import pallas as pl
from jax.experimental.pallas import tpu as pltpu


# ----------------------------- activations --------------------------------

def _apply_activation(x, activation):
    if activation == "relu":
        return jnp.maximum(x, 0.0)
    elif activation == "silu":
        return x * jax.nn.sigmoid(x)
    elif activation == "mish":
        return x * jnp.tanh(jax.nn.softplus(x))
    elif activation == "serf":
        return jax.lax.erf(jax.nn.softplus(x)) * x
    else:
        raise ValueError(f"unknown activation {activation!r}")


# ------------------------------- kernel ------------------------------------

def ann_fused_kernel(x_ref, w0_ref, b0_ref, wh_ref, bh_ref, wf_ref, bf_ref,
                     o_ref, *, n_layers, activation):
    """Whole ANN forward on one batch tile.

    BatchNorm is already folded into the weights/biases by the wrapper, so
    each layer is: bf16 matmul (f32 accumulate) + bias + activation.
    """
    h = jnp.dot(x_ref[...].astype(jnp.bfloat16), w0_ref[...],
                preferred_element_type=jnp.float32) + b0_ref[...]
    h = _apply_activation(h, activation)
    # Static unroll: n_layers is small and all weights are resident in VMEM.
    for i in range(n_layers):
        h = jnp.dot(h.astype(jnp.bfloat16), wh_ref[i],
                    preferred_element_type=jnp.float32) + bh_ref[i]
        h = _apply_activation(h, activation)
    y = jnp.dot(h.astype(jnp.bfloat16), wf_ref[...],
                preferred_element_type=jnp.float32) + bf_ref[...]
    o_ref[...] = y.astype(o_ref.dtype)


# ------------------------------- wrapper ------------------------------------

def _round_up(x, m):
    return (x + m - 1) // m * m


def _pad2d(a, rows, cols):
    return jnp.pad(a, ((0, rows - a.shape[0]), (0, cols - a.shape[1])))


def _fold_bn_into_linear(w_next, b_next, bn, eps):
    """Absorb eval-mode BN (applied to the INPUT of this Linear) into W / b.

    BN(h) @ W + b  ==  h @ (scale[:,None] * W) + (shift @ W + b)
    with scale = gamma * rsqrt(var + eps), shift = beta - mean * scale.
    """
    gamma, beta, mean, var = bn                       # each (1, H)
    scale = gamma * jax.lax.rsqrt(var + eps)          # (1, H)
    shift = beta - mean * scale                       # (1, H)
    w_f = scale.reshape(-1, 1) * w_next               # (H, out)
    b_f = shift @ w_next + b_next                     # (1, out)
    return w_f, b_f


def ann_forward(params, x, n_layers, activation, *, eps=1e-5, tile_b=None):
    B, n_input = x.shape
    n_hidden = params["first"][0].shape[1]
    n_class = params["final"][0].shape[1]

    # ---- fold each eval-mode BatchNorm into the Linear that follows it ----
    w0, b0 = params["first"]                              # no BN before it
    hidden = []
    for i in range(n_layers):
        prev_bn = params["firstbn"] if i == 0 else params["bn"][i - 1]
        w_i, b_i = params["l"][i]
        hidden.append(_fold_bn_into_linear(w_i, b_i, prev_bn, eps))
    last_bn = params["bn"][n_layers - 1] if n_layers >= 1 else params["firstbn"]
    wf, bf = _fold_bn_into_linear(*params["final"], last_bn, eps)

    # ---- pad feature dims to multiples of 128 (lane-dense), batch to tile ----
    f_in = _round_up(n_input, 128)
    h_p = _round_up(n_hidden, 128)
    c_p = _round_up(n_class, 128)

    b8 = _round_up(B, 8)
    tb = tile_b if tile_b is not None else min(b8, 512)   # real pipelining for big B
    tb = _round_up(tb, 8)
    b_p = _round_up(b8, tb)

    x_p = _pad2d(x.astype(jnp.float32), b_p, f_in)
    w0_p = _pad2d(w0, f_in, h_p).astype(jnp.bfloat16)
    b0_p = _pad2d(b0, 1, h_p)
    ls = max(n_layers, 1)            # avoid zero-sized operands when n_layers == 0
    wh_p = jnp.zeros((ls, h_p, h_p), jnp.bfloat16)
    bh_p = jnp.zeros((ls, 1, h_p), jnp.float32)
    for i, (w, b) in enumerate(hidden):
        wh_p = wh_p.at[i].set(_pad2d(w, h_p, h_p).astype(jnp.bfloat16))
        bh_p = bh_p.at[i].set(_pad2d(b, 1, h_p))
    wf_p = _pad2d(wf, h_p, c_p).astype(jnp.bfloat16)
    bf_p = _pad2d(bf, 1, c_p)

    kern = functools.partial(ann_fused_kernel, n_layers=n_layers,
                             activation=activation)
    out = pl.pallas_call(
        kern,
        out_shape=jax.ShapeDtypeStruct((b_p, c_p), jnp.float32),
        grid_spec=pltpu.PrefetchScalarGridSpec(
            num_scalar_prefetch=0,
            grid=(b_p // tb,),
            in_specs=[
                pl.BlockSpec((tb, f_in), lambda i: (i, 0)),          # x tile
                pl.BlockSpec((f_in, h_p), lambda i: (0, 0)),         # W first (resident)
                pl.BlockSpec((1, h_p), lambda i: (0, 0)),            # b first
                pl.BlockSpec((ls, h_p, h_p), lambda i: (0, 0, 0)),   # hidden W stack
                pl.BlockSpec((ls, 1, h_p), lambda i: (0, 0, 0)),     # hidden b stack
                pl.BlockSpec((h_p, c_p), lambda i: (0, 0)),          # W final
                pl.BlockSpec((1, c_p), lambda i: (0, 0)),            # b final
            ],
            out_specs=pl.BlockSpec((tb, c_p), lambda i: (i, 0)),
        ),
        compiler_params=pltpu.CompilerParams(
            dimension_semantics=("parallel",),
            vmem_limit_bytes=48 * 1024 * 1024,
        ),
    )(x_p, w0_p, b0_p, wh_p, bh_p, wf_p, bf_p)

    return out[:B, :n_class]


# --------------------------- parameter init --------------------------------

def _init_linear(key, fan_in, fan_out):
    """PyTorch nn.Linear default: U(-1/sqrt(fan_in), 1/sqrt(fan_in))."""
    kw, kb = jax.random.split(key)
    bound = 1.0 / jnp.sqrt(fan_in)
    # stored as (in, out): kernel computes x @ W (same math as PyTorch x @ W.T)
    w = jax.random.uniform(kw, (fan_in, fan_out), jnp.float32, -bound, bound)
    b = jax.random.uniform(kb, (1, fan_out), jnp.float32, -bound, bound)
    return w, b


def _init_bn(key, feats):
    km, kv, kg, kb = jax.random.split(key, 4)
    gamma = 1.0 + 0.1 * jax.random.normal(kg, (1, feats), jnp.float32)
    beta = 0.1 * jax.random.normal(kb, (1, feats), jnp.float32)
    mean = 0.1 * jax.random.normal(km, (1, feats), jnp.float32)
    var = jax.random.uniform(kv, (1, feats), jnp.float32, 0.5, 1.5)
    return gamma, beta, mean, var


def init_ann_params(key, n_layers, n_input, n_hidden, n_class):
    keys = jax.random.split(key, 2 * (n_layers + 1) + 1)
    params = {}
    params["first"] = _init_linear(keys[0], n_input, n_hidden)
    params["firstbn"] = _init_bn(keys[1], n_hidden)
    params["l"] = []
    params["bn"] = []
    for i in range(n_layers):
        params["l"].append(_init_linear(keys[2 + 2 * i], n_hidden, n_hidden))
        params["bn"].append(_init_bn(keys[3 + 2 * i], n_hidden))
    params["final"] = _init_linear(keys[-1], n_hidden, n_class)
    return params


# --------------------------- pure-JAX reference -----------------------------

def ann_reference(params, x, n_layers, activation, eps=1e-5):
    def bn(h, stats):
        g, bt, m, v = stats
        return (h - m) * jax.lax.rsqrt(v + eps) * g + bt

    w, b = params["first"]
    h = bn(_apply_activation(x @ w + b, activation), params["firstbn"])
    for i in range(n_layers):
        w, b = params["l"][i]
        h = bn(_apply_activation(h @ w + b, activation), params["bn"][i])
    wf, bf = params["final"]
    return h @ wf + bf


# --------------------------------- main -------------------------------------

if __name__ == "__main__":
    n_layers = 2
    n_input = 32
    n_hidden = 32
    n_class = 4
    activation = "relu"
    batch = 8

    key = jax.random.PRNGKey(0)
    kx, kp = jax.random.split(key)
    x = jax.random.normal(kx, (batch, n_input), jnp.float32)
    params = init_ann_params(kp, n_layers, n_input, n_hidden, n_class)

    out = ann_forward(params, x, n_layers, activation)
    out = jax.block_until_ready(out)
    assert out.shape == (batch, n_class), out.shape

    # Sanity check against a pure-JAX reference (loose tolerance: bf16 MXU
    # operands vs f32 reference).
    ref = ann_reference(params, x, n_layers, activation)
    assert jnp.allclose(out, ref, atol=2e-1, rtol=2e-1), \
        float(jnp.max(jnp.abs(out - ref)))

    print("KERNEL_OK")
</pallas_src>

<mosaic_0001>
module attributes {stable_mosaic.version = 11 : i64} {
  func.func @ann_fused_kernel(%arg0: i32, %arg1: memref<8x128xf32, #tpu.memory_space<vmem>>, %arg2: memref<128x128xbf16, #tpu.memory_space<vmem>>, %arg3: memref<1x128xf32, #tpu.memory_space<vmem>>, %arg4: memref<2x128x128xbf16, #tpu.memory_space<vmem>>, %arg5: memref<2x1x128xf32, #tpu.memory_space<vmem>>, %arg6: memref<128x128xbf16, #tpu.memory_space<vmem>>, %arg7: memref<1x128xf32, #tpu.memory_space<vmem>>, %arg8: memref<8x128xf32, #tpu.memory_space<vmem>>) attributes {dimension_semantics = [#tpu.dimension_semantics<parallel>], iteration_bounds = array<i64: 1>, scalar_prefetch = 0 : i64, scratch_operands = 0 : i64, tpu.core_type = #tpu.core_type<tc>, window_params = [{transform_indices = @transform_0, window_bounds = array<i64: 8, 128>}, {pipeline_mode = #tpu.pipeline_mode<synchronous>, transform_indices = @transform_1, window_bounds = array<i64: 128, 128>}, {pipeline_mode = #tpu.pipeline_mode<synchronous>, transform_indices = @transform_2, window_bounds = array<i64: 1, 128>}, {pipeline_mode = #tpu.pipeline_mode<synchronous>, transform_indices = @transform_3, window_bounds = array<i64: 2, 128, 128>}, {pipeline_mode = #tpu.pipeline_mode<synchronous>, transform_indices = @transform_4, window_bounds = array<i64: 2, 1, 128>}, {pipeline_mode = #tpu.pipeline_mode<synchronous>, transform_indices = @transform_5, window_bounds = array<i64: 128, 128>}, {pipeline_mode = #tpu.pipeline_mode<synchronous>, transform_indices = @transform_6, window_bounds = array<i64: 1, 128>}, {transform_indices = @transform_7, window_bounds = array<i64: 8, 128>}]} {
    %c0 = arith.constant 0 : index
    %c0_0 = arith.constant 0 : index
    %0 = vector.load %arg1[%c0, %c0_0] : memref<8x128xf32, #tpu.memory_space<vmem>>, vector<8x128xf32>
    %1 = arith.truncf %0 : vector<8x128xf32> to vector<8x128xbf16>
    %c0_1 = arith.constant 0 : index
    %c0_2 = arith.constant 0 : index
    %2 = vector.load %arg2[%c0_1, %c0_2] : memref<128x128xbf16, #tpu.memory_space<vmem>>, vector<128x128xbf16>
    %cst = arith.constant dense<0.000000e+00> : vector<8x128xf32>
    %3 = tpu.matmul %1, %2, %cst {dimension_numbers = #tpu.dot_dimension_numbers<[1], [0], [0], [1], [0, 0, 1, 1], [], []>} : vector<8x128xbf16>, vector<128x128xbf16>, vector<8x128xf32> -> vector<8x128xf32>
    %c0_3 = arith.constant 0 : index
    %c0_4 = arith.constant 0 : index
    %4 = vector.load %arg3[%c0_3, %c0_4] : memref<1x128xf32, #tpu.memory_space<vmem>>, vector<1x128xf32>
    %5 = vector.broadcast %4 : vector<1x128xf32> to vector<8x128xf32>
    %6 = arith.addf %3, %5 : vector<8x128xf32>
    %cst_5 = arith.constant 0.000000e+00 : f32
    %7 = vector.broadcast %cst_5 : f32 to vector<8x128xf32>
    %8 = arith.maximumf %6, %7 : vector<8x128xf32>
    %9 = arith.truncf %8 : vector<8x128xf32> to vector<8x128xbf16>
    %c0_6 = arith.constant 0 : index
    %c0_7 = arith.constant 0 : index
    %c0_8 = arith.constant 0 : index
    %10 = vector.load %arg4[%c0_6, %c0_7, %c0_8] : memref<2x128x128xbf16, #tpu.memory_space<vmem>>, vector<1x128x128xbf16>
    %11 = vector.shape_cast %10 : vector<1x128x128xbf16> to vector<128x128xbf16>
    %cst_9 = arith.constant dense<0.000000e+00> : vector<8x128xf32>
    %12 = tpu.matmul %9, %11, %cst_9 {dimension_numbers = #tpu.dot_dimension_numbers<[1], [0], [0], [1], [0, 0, 1, 1], [], []>} : vector<8x128xbf16>, vector<128x128xbf16>, vector<8x128xf32> -> vector<8x128xf32>
    %c0_10 = arith.constant 0 : index
    %c0_11 = arith.constant 0 : index
    %c0_12 = arith.constant 0 : index
    %13 = vector.load %arg5[%c0_10, %c0_11, %c0_12] : memref<2x1x128xf32, #tpu.memory_space<vmem>>, vector<1x1x128xf32>
    %14 = vector.shape_cast %13 : vector<1x1x128xf32> to vector<1x128xf32>
    %15 = vector.broadcast %14 : vector<1x128xf32> to vector<8x128xf32>
    %16 = arith.addf %12, %15 : vector<8x128xf32>
    %cst_13 = arith.constant 0.000000e+00 : f32
    %17 = vector.broadcast %cst_13 : f32 to vector<8x128xf32>
    %18 = arith.maximumf %16, %17 : vector<8x128xf32>
    %19 = arith.truncf %18 : vector<8x128xf32> to vector<8x128xbf16>
    %c1 = arith.constant 1 : index
    %c0_14 = arith.constant 0 : index
    %c0_15 = arith.constant 0 : index
    %20 = vector.load %arg4[%c1, %c0_14, %c0_15] : memref<2x128x128xbf16, #tpu.memory_space<vmem>>, vector<1x128x128xbf16>
    %21 = vector.shape_cast %20 : vector<1x128x128xbf16> to vector<128x128xbf16>
    %cst_16 = arith.constant dense<0.000000e+00> : vector<8x128xf32>
    %22 = tpu.matmul %19, %21, %cst_16 {dimension_numbers = #tpu.dot_dimension_numbers<[1], [0], [0], [1], [0, 0, 1, 1], [], []>} : vector<8x128xbf16>, vector<128x128xbf16>, vector<8x128xf32> -> vector<8x128xf32>
    %c1_17 = arith.constant 1 : index
    %c0_18 = arith.constant 0 : index
    %c0_19 = arith.constant 0 : index
    %23 = vector.load %arg5[%c1_17, %c0_18, %c0_19] : memref<2x1x128xf32, #tpu.memory_space<vmem>>, vector<1x1x128xf32>
    %24 = vector.shape_cast %23 : vector<1x1x128xf32> to vector<1x128xf32>
    %25 = vector.broadcast %24 : vector<1x128xf32> to vector<8x128xf32>
    %26 = arith.addf %22, %25 : vector<8x128xf32>
    %cst_20 = arith.constant 0.000000e+00 : f32
    %27 = vector.broadcast %cst_20 : f32 to vector<8x128xf32>
    %28 = arith.maximumf %26, %27 : vector<8x128xf32>
    %29 = arith.truncf %28 : vector<8x128xf32> to vector<8x128xbf16>
    %c0_21 = arith.constant 0 : index
    %c0_22 = arith.constant 0 : index
    %30 = vector.load %arg6[%c0_21, %c0_22] : memref<128x128xbf16, #tpu.memory_space<vmem>>, vector<128x128xbf16>
    %cst_23 = arith.constant dense<0.000000e+00> : vector<8x128xf32>
    %31 = tpu.matmul %29, %30, %cst_23 {dimension_numbers = #tpu.dot_dimension_numbers<[1], [0], [0], [1], [0, 0, 1, 1], [], []>} : vector<8x128xbf16>, vector<128x128xbf16>, vector<8x128xf32> -> vector<8x128xf32>
    %c0_24 = arith.constant 0 : index
    %c0_25 = arith.constant 0 : index
    %32 = vector.load %arg7[%c0_24, %c0_25] : memref<1x128xf32, #tpu.memory_space<vmem>>, vector<1x128xf32>
    %33 = vector.broadcast %32 : vector<1x128xf32> to vector<8x128xf32>
    %34 = arith.addf %31, %33 : vector<8x128xf32>
    %c0_26 = arith.constant 0 : index
    %c0_27 = arith.constant 0 : index
    %35 = vector.load %arg8[%c0_26, %c0_27] : memref<8x128xf32, #tpu.memory_space<vmem>>, vector<8x128xf32>
    tpu.vector_store %arg8[%c0_26, %c0_27], %34 {strides = array<i32>} : memref<8x128xf32, #tpu.memory_space<vmem>>, vector<8x128xf32>,
    return
  }
  func.func @transform_0(%arg0: i32) -> (i32, i32) {
    %c0_i32 = arith.constant 0 : i32
    %c0_i32_0 = arith.constant 0 : i32
    return %arg0, %c0_i32 : i32, i32
  }
  func.func @transform_1(%arg0: i32) -> (i32, i32) {
    %c0_i32 = arith.constant 0 : i32
    %c0_i32_0 = arith.constant 0 : i32
    %c0_i32_1 = arith.constant 0 : i32
    return %c0_i32, %c0_i32_0 : i32, i32
  }
  func.func @transform_2(%arg0: i32) -> (i32, i32) {
    %c0_i32 = arith.constant 0 : i32
    %c0_i32_0 = arith.constant 0 : i32
    %c0_i32_1 = arith.constant 0 : i32
    return %c0_i32, %c0_i32_0 : i32, i32
  }
  func.func @transform_3(%arg0: i32) -> (i32, i32, i32) {
    %c0_i32 = arith.constant 0 : i32
    %c0_i32_0 = arith.constant 0 : i32
    %c0_i32_1 = arith.constant 0 : i32
    %c0_i32_2 = arith.constant 0 : i32
    return %c0_i32, %c0_i32_0, %c0_i32_1 : i32, i32, i32
  }
  func.func @transform_4(%arg0: i32) -> (i32, i32, i32) {
    %c0_i32 = arith.constant 0 : i32
    %c0_i32_0 = arith.constant 0 : i32
    %c0_i32_1 = arith.constant 0 : i32
    %c0_i32_2 = arith.constant 0 : i32
    return %c0_i32, %c0_i32_0, %c0_i32_1 : i32, i32, i32
  }
  func.func @transform_5(%arg0: i32) -> (i32, i32) {
    %c0_i32 = arith.constant 0 : i32
    %c0_i32_0 = arith.constant 0 : i32
    %c0_i32_1 = arith.constant 0 : i32
    return %c0_i32, %c0_i32_0 : i32, i32
  }
  func.func @transform_6(%arg0: i32) -> (i32, i32) {
    %c0_i32 = arith.constant 0 : i32
    %c0_i32_0 = arith.constant 0 : i32
    %c0_i32_1 = arith.constant 0 : i32
    return %c0_i32, %c0_i32_0 : i32, i32
  }
  func.func @transform_7(%arg0: i32) -> (i32, i32) {
    %c0_i32 = arith.constant 0 : i32
    %c0_i32_0 = arith.constant 0 : i32
    return %arg0, %c0_i32 : i32, i32
  }
}

</mosaic_0001>

<llo_original>
// kernel: tpu_custom_call.1
$region0: #{tpu_custom_call.1}
  #allocation0 [shape = 'u32[]', space=smem, size = 0x4, offset = 0x4, fixed_abs, tag = 'smem constant byte address 0x4 - core index']
  #allocation1 [shape = 'u32[144,128]{1,0:T(1,128)}', space=vmem, size = 0x12000, scoped, tag = 'internal scratch']
  %s0 = inlined_call_operand.hbm [shape: f32[8,128], index: 0, kind: input, shape index: {}]
  %s1 = inlined_call_operand.hbm [shape: bf16[128,128], index: 1, kind: input, shape index: {}]
  %s2 = inlined_call_operand.vmem [shape: f32[1,128], index: 2, kind: input, shape index: {}]
  %s3 = inlined_call_operand.hbm [shape: bf16[2,128,128], index: 3, kind: input, shape index: {}]
  %s4 = inlined_call_operand.vmem [shape: f32[2,1,128], index: 4, kind: input, shape index: {}]
  %s5 = inlined_call_operand.hbm [shape: bf16[128,128], index: 5, kind: input, shape index: {}]
  %s6 = inlined_call_operand.vmem [shape: f32[1,128], index: 6, kind: input, shape index: {}]
  %s7 = inlined_call_operand.hbm [shape: f32[8,128], index: 7, kind: output, shape index: {}]
  %s8 = sld [smem:[#allocation0]]
  $region54: #{tpu_custom_call.1} parent=0
    _
  %s10 = ssub.s32 1, %s8
  %s11 = scalar_select 0, %s10, %s8
  $region1: #{tpu_custom_call.1} parent=0
    #allocation2 [shape = 'u8[4096]{0}', space=vmem, size = 0x1000, scoped, tag = 'input window, operand 0, single buffered']
    #allocation3 [shape = 's32[1]{0}', space=sflag, size = 0x4, scoped, tag = 'scoped memory for tpu_custom_call.1']
    #allocation4 [shape = 's32[1]{0}', space=sflag, size = 0x4, scoped, tag = 'scoped memory for tpu_custom_call.1']
    #allocation5 [shape = 'u8[32768]{0}', space=vmem, size = 0x8000, scoped, tag = 'input window, operand 1, single buffered']
    #allocation6 [shape = 's32[1]{0}', space=sflag, size = 0x4, scoped, tag = 'scoped memory for tpu_custom_call.1']
    #allocation7 [shape = 'u8[65536]{0}', space=vmem, size = 0x10000, scoped, tag = 'input window, operand 3, single buffered']
    #allocation8 [shape = 'u8[32768]{0}', space=vmem, size = 0x8000, scoped, tag = 'input window, operand 5, single buffered']
    #allocation9 [shape = 's32[1]{0}', space=sflag, size = 0x4, scoped, tag = 'scoped memory for tpu_custom_call.1']
    #allocation10 [shape = 'u8[4096]{0}', space=vmem, size = 0x1000, scoped, tag = 'output window, operand 0, single buffered']
    %12 = vsyncpa [#allocation3], 0
    %13 = vsyncpa [#allocation6], 0
    %14 = vsyncpa [#allocation9], 0
    %15 = vsyncpa [#allocation4], 0
    // Predicated region
    $region2: #{tpu_custom_call.1} parent=1 // pred_check
      _
    $region3: #{tpu_custom_call.1} parent=1 // pred_check_branch
      %17 = sbr.rel (0) target = $region5
    $region4: #{tpu_custom_call.1} parent=1 // pred_region
      %s19 = ssub.s32 128, 128
      %20 = vsyncadd [#allocation3], %s19
      %s22 = sshll.u32 [#allocation2], 4
      %s23 = int_to_ptr.vmem [resolvable:$true] %s22
      %25 = dma.hbm_to_vmem [thread:$0]  %s0, 128, %s23, [#allocation3]
    $region5: #{tpu_custom_call.1} parent=1 // pred_fallthru
      _
    // Predicated region
    $region6: #{tpu_custom_call.1} parent=1 // pred_check
      _
    $region7: #{tpu_custom_call.1} parent=1 // pred_check_branch
      %27 = sbr.rel (0) target = $region9
    $region8: #{tpu_custom_call.1} parent=1 // pred_region
      %s29 = ssub.s32 1024, 1024
      %30 = vsyncadd [#allocation6], %s29
      %s31 = sshll.u32 [#allocation5], 4
      %s32 = int_to_ptr.vmem [resolvable:$true] %s31
      %37 = dma.hbm_to_vmem [thread:$0]  %s1, 1024, %s32, [#allocation6], 64, 64, 4
    $region9: #{tpu_custom_call.1} parent=1 // pred_fallthru
      _
    // Predicated region
    $region10: #{tpu_custom_call.1} parent=1 // pred_check
      _
    $region11: #{tpu_custom_call.1} parent=1 // pred_check_branch
      %39 = sbr.rel (0) target = $region13
    $region12: #{tpu_custom_call.1} parent=1 // pred_region
      _
    $region13: #{tpu_custom_call.1} parent=1 // pred_fallthru
      _
    // Predicated region
    $region14: #{tpu_custom_call.1} parent=1 // pred_check
      _
    $region15: #{tpu_custom_call.1} parent=1 // pred_check_branch
      %41 = sbr.rel (0) target = $region17
    $region16: #{tpu_custom_call.1} parent=1 // pred_region
      %s43 = ssub.s32 2048, 2048
      %44 = vsyncadd [#allocation6], %s43
      %s45 = sshll.u32 [#allocation7], 4
      %s46 = int_to_ptr.vmem [resolvable:$true] %s45
      %51 = dma.hbm_to_vmem [thread:$0]  %s3, 2048, %s46, [#allocation6], 64, 64, 4
    $region17: #{tpu_custom_call.1} parent=1 // pred_fallthru
      _
    // Predicated region
    $region18: #{tpu_custom_call.1} parent=1 // pred_check
      _
    $region19: #{tpu_custom_call.1} parent=1 // pred_check_branch
      %53 = sbr.rel (0) target = $region21
    $region20: #{tpu_custom_call.1} parent=1 // pred_region
      _
    $region21: #{tpu_custom_call.1} parent=1 // pred_fallthru
      _
    // Predicated region
    $region22: #{tpu_custom_call.1} parent=1 // pred_check
      _
    $region23: #{tpu_custom_call.1} parent=1 // pred_check_branch
      %55 = sbr.rel (0) target = $region25
    $region24: #{tpu_custom_call.1} parent=1 // pred_region
      %s57 = ssub.s32 1024, 1024
      %58 = vsyncadd [#allocation9], %s57
      %s59 = sshll.u32 [#allocation8], 4
      %s60 = int_to_ptr.vmem [resolvable:$true] %s59
      %65 = dma.hbm_to_vmem [thread:$0]  %s5, 1024, %s60, [#allocation9], 64, 64, 4
    $region25: #{tpu_custom_call.1} parent=1 // pred_fallthru
      _
    // Predicated region
    $region26: #{tpu_custom_call.1} parent=1 // pred_check
      _
    $region27: #{tpu_custom_call.1} parent=1 // pred_check_branch
      %67 = sbr.rel (0) target = $region29
    $region28: #{tpu_custom_call.1} parent=1 // pred_region
      _
    $region29: #{tpu_custom_call.1} parent=1 // pred_fallthru
      _
    // Predicated region
    $region30: #{tpu_custom_call.1} parent=1 // pred_check
      _
    $region31: #{tpu_custom_call.1} parent=1 // pred_check_branch
      %69 = sbr.rel (0) target = $region33
    $region32: #{tpu_custom_call.1} parent=1 // pred_region
      %70 = dma.done [#allocation3], 128
    $region33: #{tpu_custom_call.1} parent=1 // pred_fallthru
      _
    // Predicated region
    $region34: #{tpu_custom_call.1} parent=1 // pred_check
      _
    $region35: #{tpu_custom_call.1} parent=1 // pred_check_branch
      %72 = sbr.rel (0) target = $region37
    $region36: #{tpu_custom_call.1} parent=1 // pred_region
      %73 = dma.done [#allocation6], 1024
    $region37: #{tpu_custom_call.1} parent=1 // pred_fallthru
      _
    // Predicated region
    $region38: #{tpu_custom_call.1} parent=1 // pred_check
      _
    $region39: #{tpu_custom_call.1} parent=1 // pred_check_branch
      %75 = sbr.rel (0) target = $region41
    $region40: #{tpu_custom_call.1} parent=1 // pred_region
      %76 = dma.done [#allocation6], 2048
    $region41: #{tpu_custom_call.1} parent=1 // pred_fallthru
      _
    // Predicated region
    $region42: #{tpu_custom_call.1} parent=1 // pred_check
      _
    $region43: #{tpu_custom_call.1} parent=1 // pred_check_branch
      %78 = sbr.rel (0) target = $region45
    $region44: #{tpu_custom_call.1} parent=1 // pred_region
      %79 = dma.done [#allocation9], 1024
    $region45: #{tpu_custom_call.1} parent=1 // pred_fallthru
      _
    %v81 = vld [vmem:[#allocation2] sm:$0xff]
    %v82 = vpack.c.bf16 %v81, %v81
    %v83 = vld [vmem:[#allocation5] sm:$0xf]
    %v84 = vld [vmem:[#allocation5 + $0x4] sm:$0xf]
    %v85 = vld [vmem:[#allocation5 + $0x8] sm:$0xf]
    %v86 = vld [vmem:[#allocation5 + $0xc] sm:$0xf]
    %v87 = vld [vmem:[#allocation5 + $0x10] sm:$0xf]
    %v88 = vld [vmem:[#allocation5 + $0x14] sm:$0xf]
    %v89 = vld [vmem:[#allocation5 + $0x18] sm:$0xf]
    %v90 = vld [vmem:[#allocation5 + $0x1c] sm:$0xf]
    %v91 = vld [vmem:[#allocation5 + $0x20] sm:$0xf]
    %v92 = vld [vmem:[#allocation5 + $0x24] sm:$0xf]
    %v93 = vld [vmem:[#allocation5 + $0x28] sm:$0xf]
    %v94 = vld [vmem:[#allocation5 + $0x2c] sm:$0xf]
    %v95 = vld [vmem:[#allocation5 + $0x30] sm:$0xf]
    %v96 = vld [vmem:[#allocation5 + $0x34] sm:$0xf]
    %v97 = vld [vmem:[#allocation5 + $0x38] sm:$0xf]
    %v98 = vld [vmem:[#allocation5 + $0x3c] sm:$0xf]
    %v99 = vld [vmem:[%s2] sm:$0x1]
    %v101 = vlaneseq
    %v102 = vshrl.u32 %v101, 7
    %v103 = vsub.s32 0, %v102
    %v104 = vrot.slane %v99, %v103
    %v122 = vunpack.c.l.b16 %v83
    %v123 = vunpack.c.l.b16 %v84
    %v124 = vunpack.c.l.b16 %v85
    %v125 = vunpack.c.l.b16 %v86
    %v126 = vunpack.c.l.b16 %v87
    %v127 = vunpack.c.l.b16 %v88
    %v128 = vunpack.c.l.b16 %v89
    %v129 = vunpack.c.l.b16 %v90
    %v130 = vunpack.c.l.b16 %v91
    %v131 = vunpack.c.l.b16 %v92
    %v132 = vunpack.c.l.b16 %v93
    %v133 = vunpack.c.l.b16 %v94
    %v134 = vunpack.c.l.b16 %v95
    %v135 = vunpack.c.l.b16 %v96
    %v136 = vunpack.c.l.b16 %v97
    %v137 = vunpack.c.l.b16 %v98
    %v138 = vpack.c.b16 %v123, %v122
    %v139 = vpack.c.b16 %v125, %v124
    %v140 = vpack.c.b16 %v127, %v126
    %v141 = vpack.c.b16 %v129, %v128
    %v142 = vpack.c.b16 %v131, %v130
    %v143 = vpack.c.b16 %v133, %v132
    %v144 = vpack.c.b16 %v135, %v134
    %v145 = vpack.c.b16 %v137, %v136
    %154 = vmatprep.subr.bf16.mxu0 0
    %155 = vmatpush1.bf16.msra.mxu0 %v138
    %156 = vmatprep.subr.bf16.mxu0 0
    %157 = vmatpush1.bf16.msra.mxu0 %v139
    %158 = vmatprep.subr.bf16.mxu0 0
    %159 = vmatpush1.bf16.msra.mxu0 %v140
    %160 = vmatprep.subr.bf16.mxu0 0
    %161 = vmatpush1.bf16.msra.mxu0 %v141
    %162 = vmatprep.subr.bf16.mxu0 0
    %163 = vmatpush1.bf16.msra.mxu0 %v142
    %164 = vmatprep.subr.bf16.mxu0 0
    %165 = vmatpush1.bf16.msra.mxu0 %v143
    %166 = vmatprep.subr.bf16.mxu0 0
    %167 = vmatpush1.bf16.msra.mxu0 %v144
    %168 = vmatprep.subr.bf16.mxu0 0
    %169 = vmatpush1.bf16.msra.mxu0 %v145
    %170 = vmatprep.subr.bf16.mxu0 0
    %171 = vmatpush1.bf16.msra.mxu0 0
    %172 = vmatprep.subr.bf16.mxu0 0
    %173 = vmatpush1.bf16.msra.mxu0 0
    %174 = vmatprep.subr.bf16.mxu0 0
    %175 = vmatpush1.bf16.msra.mxu0 0
    %176 = vmatprep.subr.bf16.mxu0 0
    %177 = vmatpush1.bf16.msra.mxu0 0
    %178 = vmatprep.subr.bf16.mxu0 0
    %179 = vmatpush1.bf16.msra.mxu0 0
    %180 = vmatprep.subr.bf16.mxu0 0
    %181 = vmatpush1.bf16.msra.mxu0 0
    %182 = vmatprep.subr.bf16.mxu0 0
    %183 = vmatpush1.bf16.msra.mxu0 0
    %184 = vmatprep.subr.bf16.mxu0 0
    %185 = vmatpush1.bf16.msra.mxu0 0
    %186 = vmatprep.mubr.bf16.mxu0 0
    %187 = vmatmul.mubr.bf16.gmra.mrb[0].mxu0 %v82
    %v188 = vpop.f32.mrb[0].mxu0
    %v189 = vadd.f32 %v104, %v188
    %v190 = vpop.f32.mrb[0].mxu0
    %v191 = vpop.f32.mrb[0].mxu0
    %v192 = vpop.f32.mrb[0].mxu0
    %193 = vdwg.mxu0
    %v194 = vmax.f32 %v189, 0.0
    %v195 = vpack.c.bf16 %v194, %v194
    %v196 = vld [vmem:[#allocation7] sm:$0xf]
    %v197 = vld [vmem:[#allocation7 + $0x4] sm:$0xf]
    %v198 = vld [vmem:[#allocation7 + $0x8] sm:$0xf]
    %v199 = vld [vmem:[#allocation7 + $0xc] sm:$0xf]
    %v200 = vld [vmem:[#allocation7 + $0x10] sm:$0xf]
    %v201 = vld [vmem:[#allocation7 + $0x14] sm:$0xf]
    %v202 = vld [vmem:[#allocation7 + $0x18] sm:$0xf]
    %v203 = vld [vmem:[#allocation7 + $0x1c] sm:$0xf]
    %v204 = vld [vmem:[#allocation7 + $0x20] sm:$0xf]
    %v205 = vld [vmem:[#allocation7 + $0x24] sm:$0xf]
    %v206 = vld [vmem:[#allocation7 + $0x28] sm:$0xf]
    %v207 = vld [vmem:[#allocation7 + $0x2c] sm:$0xf]
    %v208 = vld [vmem:[#allocation7 + $0x30] sm:$0xf]
    %v209 = vld [vmem:[#allocation7 + $0x34] sm:$0xf]
    %v210 = vld [vmem:[#allocation7 + $0x38] sm:$0xf]
    %v211 = vld [vmem:[#allocation7 + $0x3c] sm:$0xf]
    %v212 = vld [vmem:[%s4] sm:$0x1]
    %v214 = vlaneseq
    %v215 = vshrl.u32 %v214, 7
    %v216 = vsub.s32 0, %v215
    %v217 = vrot.slane %v212, %v216
    %v235 = vunpack.c.l.b16 %v196
    %v236 = vunpack.c.l.b16 %v197
    %v237 = vunpack.c.l.b16 %v198
    %v238 = vunpack.c.l.b16 %v199
    %v239 = vunpack.c.l.b16 %v200
    %v240 = vunpack.c.l.b16 %v201
    %v241 = vunpack.c.l.b16 %v202
    %v242 = vunpack.c.l.b16 %v203
    %v243 = vunpack.c.l.b16 %v204
    %v244 = vunpack.c.l.b16 %v205
    %v245 = vunpack.c.l.b16 %v206
    %v246 = vunpack.c.l.b16 %v207
    %v247 = vunpack.c.l.b16 %v208
    %v248 = vunpack.c.l.b16 %v209
    %v249 = vunpack.c.l.b16 %v210
    %v250 = vunpack.c.l.b16 %v211
    %v251 = vpack.c.b16 %v236, %v235
    %v252 = vpack.c.b16 %v238, %v237
    %v253 = vpack.c.b16 %v240, %v239
    %v254 = vpack.c.b16 %v242, %v241
    %v255 = vpack.c.b16 %v244, %v243
    %v256 = vpack.c.b16 %v246, %v245
    %v257 = vpack.c.b16 %v248, %v247
    %v258 = vpack.c.b16 %v250, %v249
    %267 = vmatprep.subr.bf16.mxu0 0
    %268 = vmatpush1.bf16.msra.mxu0 %v251
    %269 = vmatprep.subr.bf16.mxu0 0
    %270 = vmatpush1.bf16.msra.mxu0 %v252
    %271 = vmatprep.subr.bf16.mxu0 0
    %272 = vmatpush1.bf16.msra.mxu0 %v253
    %273 = vmatprep.subr.bf16.mxu0 0
    %274 = vmatpush1.bf16.msra.mxu0 %v254
    %275 = vmatprep.subr.bf16.mxu0 0
    %276 = vmatpush1.bf16.msra.mxu0 %v255
    %277 = vmatprep.subr.bf16.mxu0 0
    %278 = vmatpush1.bf16.msra.mxu0 %v256
    %279 = vmatprep.subr.bf16.mxu0 0
    %280 = vmatpush1.bf16.msra.mxu0 %v257
    %281 = vmatprep.subr.bf16.mxu0 0
    %282 = vmatpush1.bf16.msra.mxu0 %v258
    %283 = vmatprep.subr.bf16.mxu0 0
    %284 = vmatpush1.bf16.msra.mxu0 0
    %285 = vmatprep.subr.bf16.mxu0 0
    %286 = vmatpush1.bf16.msra.mxu0 0
    %287 = vmatprep.subr.bf16.mxu0 0
    %288 = vmatpush1.bf16.msra.mxu0 0
    %289 = vmatprep.subr.bf16.mxu0 0
    %290 = vmatpush1.bf16.msra.mxu0 0
    %291 = vmatprep.subr.bf16.mxu0 0
    %292 = vmatpush1.bf16.msra.mxu0 0
    %293 = vmatprep.subr.bf16.mxu0 0
    %294 = vmatpush1.bf16.msra.mxu0 0
    %295 = vmatprep.subr.bf16.mxu0 0
    %296 = vmatpush1.bf16.msra.mxu0 0
    %297 = vmatprep.subr.bf16.mxu0 0
    %298 = vmatpush1.bf16.msra.mxu0 0
    %299 = vmatprep.mubr.bf16.mxu0 0
    %300 = vmatmul.mubr.bf16.gmra.mrb[0].mxu0 %v195
    %v301 = vpop.f32.mrb[0].mxu0
    %v302 = vadd.f32 %v217, %v301
    %v303 = vpop.f32.mrb[0].mxu0
    %v304 = vpop.f32.mrb[0].mxu0
    %v305 = vpop.f32.mrb[0].mxu0
    %306 = vdwg.mxu0
    %v307 = vmax.f32 %v302, 0.0
    %v308 = vpack.c.bf16 %v307, %v307
    %s309 = scalar_lea.vmem [#allocation7], 64
    %v310 = vld [vmem:[%s309] sm:$0xf]
    %v311 = vld [vmem:[%s309 + $0x4] sm:$0xf]
    %v312 = vld [vmem:[%s309 + $0x8] sm:$0xf]
    %v313 = vld [vmem:[%s309 + $0xc] sm:$0xf]
    %v314 = vld [vmem:[%s309 + $0x10] sm:$0xf]
    %v315 = vld [vmem:[%s309 + $0x14] sm:$0xf]
    %v316 = vld [vmem:[%s309 + $0x18] sm:$0xf]
    %v317 = vld [vmem:[%s309 + $0x1c] sm:$0xf]
    %v318 = vld [vmem:[%s309 + $0x20] sm:$0xf]
    %v319 = vld [vmem:[%s309 + $0x24] sm:$0xf]
    %v320 = vld [vmem:[%s309 + $0x28] sm:$0xf]
    %v321 = vld [vmem:[%s309 + $0x2c] sm:$0xf]
    %v322 = vld [vmem:[%s309 + $0x30] sm:$0xf]
    %v323 = vld [vmem:[%s309 + $0x34] sm:$0xf]
    %v324 = vld [vmem:[%s309 + $0x38] sm:$0xf]
    %v325 = vld [vmem:[%s309 + $0x3c] sm:$0xf]
    %s326 = scalar_lea.vmem %s4, 1
    %v327 = vld [vmem:[%s326] sm:$0x1]
    %v329 = vlaneseq
    %v330 = vshrl.u32 %v329, 7
    %v331 = vsub.s32 0, %v330
    %v332 = vrot.slane %v327, %v331
    %v350 = vunpack.c.l.b16 %v310
    %v351 = vunpack.c.l.b16 %v311
    %v352 = vunpack.c.l.b16 %v312
    %v353 = vunpack.c.l.b16 %v313
    %v354 = vunpack.c.l.b16 %v314
    %v355 = vunpack.c.l.b16 %v315
    %v356 = vunpack.c.l.b16 %v316
    %v357 = vunpack.c.l.b16 %v317
    %v358 = vunpack.c.l.b16 %v318
    %v359 = vunpack.c.l.b16 %v319
    %v360 = vunpack.c.l.b16 %v320
    %v361 = vunpack.c.l.b16 %v321
    %v362 = vunpack.c.l.b16 %v322
    %v363 = vunpack.c.l.b16 %v323
    %v364 = vunpack.c.l.b16 %v324
    %v365 = vunpack.c.l.b16 %v325
    %v366 = vpack.c.b16 %v351, %v350
    %v367 = vpack.c.b16 %v353, %v352
    %v368 = vpack.c.b16 %v355, %v354
    %v369 = vpack.c.b16 %v357, %v356
    %v370 = vpack.c.b16 %v359, %v358
    %v371 = vpack.c.b16 %v361, %v360
    %v372 = vpack.c.b16 %v363, %v362
    %v373 = vpack.c.b16 %v365, %v364
    %382 = vmatprep.subr.bf16.mxu0 0
    %383 = vmatpush1.bf16.msra.mxu0 %v366
    %384 = vmatprep.subr.bf16.mxu0 0
    %385 = vmatpush1.bf16.msra.mxu0 %v367
    %386 = vmatprep.subr.bf16.mxu0 0
    %387 = vmatpush1.bf16.msra.mxu0 %v368
    %388 = vmatprep.subr.bf16.mxu0 0
    %389 = vmatpush1.bf16.msra.mxu0 %v369
    %390 = vmatprep.subr.bf16.mxu0 0
    %391 = vmatpush1.bf16.msra.mxu0 %v370
    %392 = vmatprep.subr.bf16.mxu0 0
    %393 = vmatpush1.bf16.msra.mxu0 %v371
    %394 = vmatprep.subr.bf16.mxu0 0
    %395 = vmatpush1.bf16.msra.mxu0 %v372
    %396 = vmatprep.subr.bf16.mxu0 0
    %397 = vmatpush1.bf16.msra.mxu0 %v373
    %398 = vmatprep.subr.bf16.mxu0 0
    %399 = vmatpush1.bf16.msra.mxu0 0
    %400 = vmatprep.subr.bf16.mxu0 0
    %401 = vmatpush1.bf16.msra.mxu0 0
    %402 = vmatprep.subr.bf16.mxu0 0
    %403 = vmatpush1.bf16.msra.mxu0 0
    %404 = vmatprep.subr.bf16.mxu0 0
    %405 = vmatpush1.bf16.msra.mxu0 0
    %406 = vmatprep.subr.bf16.mxu0 0
    %407 = vmatpush1.bf16.msra.mxu0 0
    %408 = vmatprep.subr.bf16.mxu0 0
    %409 = vmatpush1.bf16.msra.mxu0 0
    %410 = vmatprep.subr.bf16.mxu0 0
    %411 = vmatpush1.bf16.msra.mxu0 0
    %412 = vmatprep.subr.bf16.mxu0 0
    %413 = vmatpush1.bf16.msra.mxu0 0
    %414 = vmatprep.mubr.bf16.mxu0 0
    %415 = vmatmul.mubr.bf16.gmra.mrb[0].mxu0 %v308
    %v416 = vpop.f32.mrb[0].mxu0
    %v417 = vadd.f32 %v332, %v416
    %v418 = vpop.f32.mrb[0].mxu0
    %v419 = vpop.f32.mrb[0].mxu0
    %v420 = vpop.f32.mrb[0].mxu0
    %421 = vdwg.mxu0
    %v422 = vmax.f32 %v417, 0.0
    %v423 = vpack.c.bf16 %v422, %v422
    %v424 = vld [vmem:[#allocation8] sm:$0xf]
    %v425 = vld [vmem:[#allocation8 + $0x4] sm:$0xf]
    %v426 = vld [vmem:[#allocation8 + $0x8] sm:$0xf]
    %v427 = vld [vmem:[#allocation8 + $0xc] sm:$0xf]
    %v428 = vld [vmem:[#allocation8 + $0x10] sm:$0xf]
    %v429 = vld [vmem:[#allocation8 + $0x14] sm:$0xf]
    %v430 = vld [vmem:[#allocation8 + $0x18] sm:$0xf]
    %v431 = vld [vmem:[#allocation8 + $0x1c] sm:$0xf]
    %v432 = vld [vmem:[#allocation8 + $0x20] sm:$0xf]
    %v433 = vld [vmem:[#allocation8 + $0x24] sm:$0xf]
    %v434 = vld [vmem:[#allocation8 + $0x28] sm:$0xf]
    %v435 = vld [vmem:[#allocation8 + $0x2c] sm:$0xf]
    %v436 = vld [vmem:[#allocation8 + $0x30] sm:$0xf]
    %v437 = vld [vmem:[#allocation8 + $0x34] sm:$0xf]
    %v438 = vld [vmem:[#allocation8 + $0x38] sm:$0xf]
    %v439 = vld [vmem:[#allocation8 + $0x3c] sm:$0xf]
    %v440 = vld [vmem:[%s6] sm:$0x1]
    %v442 = vlaneseq
    %v443 = vshrl.u32 %v442, 7
    %v444 = vsub.s32 0, %v443
    %v445 = vrot.slane %v440, %v444
    %v463 = vunpack.c.l.b16 %v424
    %v464 = vunpack.c.l.b16 %v425
    %v465 = vunpack.c.l.b16 %v426
    %v466 = vunpack.c.l.b16 %v427
    %v467 = vunpack.c.l.b16 %v428
    %v468 = vunpack.c.l.b16 %v429
    %v469 = vunpack.c.l.b16 %v430
    %v470 = vunpack.c.l.b16 %v431
    %v471 = vunpack.c.l.b16 %v432
    %v472 = vunpack.c.l.b16 %v433
    %v473 = vunpack.c.l.b16 %v434
    %v474 = vunpack.c.l.b16 %v435
    %v475 = vunpack.c.l.b16 %v436
    %v476 = vunpack.c.l.b16 %v437
    %v477 = vunpack.c.l.b16 %v438
    %v478 = vunpack.c.l.b16 %v439
    %v479 = vpack.c.b16 %v464, %v463
    %v480 = vpack.c.b16 %v466, %v465
    %v481 = vpack.c.b16 %v468, %v467
    %v482 = vpack.c.b16 %v470, %v469
    %v483 = vpack.c.b16 %v472, %v471
    %v484 = vpack.c.b16 %v474, %v473
    %v485 = vpack.c.b16 %v476, %v475
    %v486 = vpack.c.b16 %v478, %v477
    %495 = vmatprep.subr.bf16.mxu0 0
    %496 = vmatpush1.bf16.msra.mxu0 %v479
    %497 = vmatprep.subr.bf16.mxu0 0
    %498 = vmatpush1.bf16.msra.mxu0 %v480
    %499 = vmatprep.subr.bf16.mxu0 0
    %500 = vmatpush1.bf16.msra.mxu0 %v481
    %501 = vmatprep.subr.bf16.mxu0 0
    %502 = vmatpush1.bf16.msra.mxu0 %v482
    %503 = vmatprep.subr.bf16.mxu0 0
    %504 = vmatpush1.bf16.msra.mxu0 %v483
    %505 = vmatprep.subr.bf16.mxu0 0
    %506 = vmatpush1.bf16.msra.mxu0 %v484
    %507 = vmatprep.subr.bf16.mxu0 0
    %508 = vmatpush1.bf16.msra.mxu0 %v485
    %509 = vmatprep.subr.bf16.mxu0 0
    %510 = vmatpush1.bf16.msra.mxu0 %v486
    %511 = vmatprep.subr.bf16.mxu0 0
    %512 = vmatpush1.bf16.msra.mxu0 0
    %513 = vmatprep.subr.bf16.mxu0 0
    %514 = vmatpush1.bf16.msra.mxu0 0
    %515 = vmatprep.subr.bf16.mxu0 0
    %516 = vmatpush1.bf16.msra.mxu0 0
    %517 = vmatprep.subr.bf16.mxu0 0
    %518 = vmatpush1.bf16.msra.mxu0 0
    %519 = vmatprep.subr.bf16.mxu0 0
    %520 = vmatpush1.bf16.msra.mxu0 0
    %521 = vmatprep.subr.bf16.mxu0 0
    %522 = vmatpush1.bf16.msra.mxu0 0
    %523 = vmatprep.subr.bf16.mxu0 0
    %524 = vmatpush1.bf16.msra.mxu0 0
    %525 = vmatprep.subr.bf16.mxu0 0
    %526 = vmatpush1.bf16.msra.mxu0 0
    %527 = vmatprep.mubr.bf16.mxu0 0
    %528 = vmatmul.mubr.bf16.gmra.mrb[0].mxu0 %v423
    %v529 = vpop.f32.mrb[0].mxu0
    %v530 = vadd.f32 %v445, %v529
    %v531 = vpop.f32.mrb[0].mxu0
    %v532 = vpop.f32.mrb[0].mxu0
    %v533 = vpop.f32.mrb[0].mxu0
    %534 = vdwg.mxu0
    %535 = vst [vmem:[#allocation10] sm:$0xff] %v530
    // Predicated region
    $region46: #{tpu_custom_call.1} parent=1 // pred_check
      _
    $region47: #{tpu_custom_call.1} parent=1 // pred_check_branch
      %537 = sbr.rel (0) target = $region49
    $region48: #{tpu_custom_call.1} parent=1 // pred_region
      %s539 = ssub.s32 128, 128
      %540 = vsyncadd [#allocation4], %s539
      %s542 = sshll.u32 [#allocation10], 4
      %s543 = int_to_ptr.vmem [resolvable:$true] %s542
      %545 = dma.vmem_to_hbm [thread:$0]  %s543, 128, %s7, [#allocation4]
    $region49: #{tpu_custom_call.1} parent=1 // pred_fallthru
      _
    // Predicated region
    $region50: #{tpu_custom_call.1} parent=1 // pred_check
      _
    $region51: #{tpu_custom_call.1} parent=1 // pred_check_branch
      %547 = sbr.rel (0) target = $region53
    $region52: #{tpu_custom_call.1} parent=1 // pred_region
      %548 = dma.done [#allocation4], 128
    $region53: #{tpu_custom_call.1} parent=1 // pred_fallthru
      _
    %549 = vsyncpa [#allocation3], 1
    %550 = vsyncpa [#allocation6], 1
    %551 = vsyncpa [#allocation9], 1
    %552 = vsyncpa [#allocation4], 1

</llo_original>
